<compile_context>
chip_gen: v7x
topology: tpu7x:2x2x1
jax: 0.10.0
libtpu: 0.0.40
codegen_flags: <defaults>
</compile_context>

<pallas_src>
import functools

import jax
import jax.numpy as jnp
from jax.experimental import pallas as pl
from jax.experimental.pallas import tpu as pltpu


def _round_up(x, m):
    return ((x + m - 1) // m) * m


def _cdiv(a, b):
    return (a + b - 1) // b


def self_output_kernel(x_ref, res_ref, w_ref, params_ref, *rest,
                       eps, inv_d, seg_matmul):
    # x_ref / res_ref: (tm, P) activation tiles (native dtype); for small D the
    #   rows are lane-packed (P = 128, each row holds 128/D logical rows).
    # w_ref:      (P, P) weight, pre-transposed (in, out); block-diagonal if packed.
    # params_ref: (3, P) f32: [dense bias, LN gamma, LN beta], tiled per segment.
    # rest: (s_ref, o_ref) when seg_matmul else (o_ref,); s_ref is a (P, P)
    #   block-diagonal ones matrix for the MXU-based segmented LN reduction.
    if seg_matmul:
        s_ref, o_ref = rest
    else:
        (o_ref,) = rest

    # Dense: x @ W (weight already transposed in the wrapper -> no in-kernel
    # transpose).  Native-dtype operands feed the MXU directly, f32 accumulate.
    h = jax.lax.dot_general(
        x_ref[...], w_ref[...],
        dimension_numbers=(((1,), (0,)), ((), ())),
        preferred_element_type=jnp.float32,
    )

    bias = params_ref[0:1, :]
    gamma = params_ref[1:2, :]
    beta = params_ref[2:3, :]

    # Dropout: identity at inference time.
    # TODO(synk): training-mode dropout RNG not implemented.

    # Bias + residual add (f32).
    y = h + bias + res_ref[...].astype(jnp.float32)

    if seg_matmul:
        # Segmented LayerNorm: S is block-diagonal ones, so y @ S returns each
        # D-wide segment's sum broadcast to all of that segment's lanes (MXU).
        seg_sum = jax.lax.dot_general(
            y, s_ref[...], dimension_numbers=(((1,), (0,)), ((), ())),
            preferred_element_type=jnp.float32)
        mean = seg_sum * inv_d
        centered = y - mean
        seg_sq = jax.lax.dot_general(
            centered * centered, s_ref[...],
            dimension_numbers=(((1,), (0,)), ((), ())),
            preferred_element_type=jnp.float32)
        var = seg_sq * inv_d
    else:
        mean = jnp.sum(y, axis=-1, keepdims=True) * inv_d
        centered = y - mean
        var = jnp.sum(centered * centered, axis=-1, keepdims=True) * inv_d

    norm = centered * jax.lax.rsqrt(var + eps)
    o_ref[...] = (norm * gamma + beta).astype(o_ref.dtype)


def _vmem_budget_bytes():
    """Generation-aware VMEM budget: ~5/8 of physical, capped at 80 MiB.

    v7x has 64 MiB VMEM per TensorCore -> ~40 MiB budget; v5e/v6e have 128 MiB
    -> 80 MiB.  Falls back to the conservative v7x number if the query fails.
    """
    cap = 64 * 1024 * 1024
    try:
        cap = int(pltpu.get_tpu_info().vmem_capacity_bytes)
    except Exception:
        pass
    return min(cap * 5 // 8, 80 * 1024 * 1024)


def _pick_tile_rows(n_rows, lanes, act_itemsize, out_itemsize, const_bytes,
                    budget_bytes, tm_max=4096):
    """Largest row tile that fits the VMEM budget while keeping >= 2 grid steps."""
    if n_rows <= 8:
        return n_rows
    # Per-row resident bytes: x & residual tiles (double-buffered), output tile
    # (double-buffered) plus ~4 f32 lane-wide Mosaic temporaries from the LN math.
    per_row = 2 * lanes * act_itemsize * 2 + 2 * lanes * out_itemsize + 4 * lanes * 4
    budget = budget_bytes - const_bytes
    tm = budget // per_row if budget > 0 else 8
    tm = min(tm, tm_max)
    # Keep the grid at >= 2 steps so the 'parallel' axis can shard across v7x's
    # two TensorCores (single-TC v5e/v6e lose nothing).
    if n_rows >= 16:
        tm = min(tm, _round_up(_cdiv(n_rows, 2), 8))
    tm = max(8, (tm // 8) * 8)
    tm = min(tm, _round_up(n_rows, 8))
    return int(tm)


def self_output(hidden_states, input_tensor, weight, bias, gamma, beta,
                *, eps=1e-12, tm=None):
    """hidden_states, input_tensor: (B, S, D). weight: (D_out, D_in) as in nn.Linear."""
    B, S, D = hidden_states.shape
    M = B * S

    # Lane-dense packing factor.
    if D < 128 and 128 % D == 0 and M % (128 // D) == 0:
        p = 128 // D
    else:
        p = 1
    P = p * D
    Mp = M // p

    x2d = hidden_states.reshape(Mp, P)
    r2d = input_tensor.reshape(Mp, P)

    # Weight: transpose once in the wrapper ((in, out) layout); replicate into a
    # P x P block-diagonal when packed so each segment gets its own dense.
    wt = weight.T
    if p > 1:
        wt = jnp.kron(jnp.eye(p, dtype=wt.dtype), wt)

    # bias / gamma / beta packed into one (3, P) f32 operand, tiled per segment.
    params = jnp.stack([
        jnp.tile(bias.astype(jnp.float32), p),
        jnp.tile(gamma.astype(jnp.float32), p),
        jnp.tile(beta.astype(jnp.float32), p),
    ])

    seg_matmul = p > 1
    operands = [x2d, r2d, wt, params]
    # Constant-index operands are double-buffered by the pipeline; charge 2x.
    const_bytes = 2 * P * P * wt.dtype.itemsize + 2 * 8 * P * 4
    if seg_matmul:
        seg = jnp.kron(jnp.eye(p, dtype=jnp.float32),
                       jnp.ones((D, D), jnp.float32))
        operands.append(seg)
        const_bytes += 2 * P * P * 4

    vmem_budget = _vmem_budget_bytes()
    if tm is None:
        tm = _pick_tile_rows(
            Mp, P,
            act_itemsize=x2d.dtype.itemsize,
            out_itemsize=hidden_states.dtype.itemsize,
            const_bytes=const_bytes,
            budget_bytes=vmem_budget - 4 * 1024 * 1024,  # headroom for internal scratch
        )
    grid = _cdiv(Mp, tm)   # partial tail block handled by Pallas masking

    kernel = functools.partial(self_output_kernel, eps=float(eps),
                               inv_d=1.0 / D, seg_matmul=seg_matmul)

    matmul_flops = 2 * Mp * P * P * (3 if seg_matmul else 1)
    cost = pl.CostEstimate(
        flops=matmul_flops + 10 * Mp * P,
        transcendentals=Mp * (P if seg_matmul else 1),
        bytes_accessed=(Mp * P * (2 * x2d.dtype.itemsize
                                  + hidden_states.dtype.itemsize)
                        + const_bytes // 2),
    )

    def const_spec(shape):
        return pl.BlockSpec(shape, lambda i: (0, 0))

    in_specs = [
        pl.BlockSpec((tm, P), lambda i: (i, 0)),   # hidden_states tile
        pl.BlockSpec((tm, P), lambda i: (i, 0)),   # residual tile
        const_spec((P, P)),                        # weight (resident, pre-transposed)
        const_spec((3, P)),                        # bias / gamma / beta (f32)
    ]
    if seg_matmul:
        in_specs.append(const_spec((P, P)))        # block-diagonal segment-sum matrix

    out2d = pl.pallas_call(
        kernel,
        out_shape=jax.ShapeDtypeStruct((Mp, P), hidden_states.dtype),
        grid_spec=pltpu.PrefetchScalarGridSpec(
            num_scalar_prefetch=0,
            grid=(grid,),
            in_specs=in_specs,
            out_specs=pl.BlockSpec((tm, P), lambda i: (i, 0)),
        ),
        compiler_params=pltpu.CompilerParams(
            dimension_semantics=("parallel",),
            vmem_limit_bytes=int(vmem_budget),
        ),
        cost_estimate=cost,
    )(*operands)

    return out2d.reshape(B, S, D)


def self_output_reference(hidden_states, input_tensor, weight, bias, gamma, beta, eps=1e-12):
    h = jnp.einsum("bsd,od->bso", hidden_states, weight) + bias
    y = h + input_tensor
    mean = jnp.mean(y, axis=-1, keepdims=True)
    var = jnp.mean((y - mean) ** 2, axis=-1, keepdims=True)
    return (y - mean) * jax.lax.rsqrt(var + eps) * gamma + beta


if __name__ == "__main__":
    # config: attention_dim=32, layer_norm_eps=1e-12, hidden_dropout_prob=0.1 (inference => identity)
    B, S, D = 2, 8, 32
    eps = 1e-12

    key = jax.random.PRNGKey(0)
    k_x, k_r, k_w, k_b, k_g, k_beta = jax.random.split(key, 6)

    hidden_states = jax.random.normal(k_x, (B, S, D), dtype=jnp.float32)
    input_tensor = jax.random.normal(k_r, (B, S, D), dtype=jnp.float32)

    # Deterministic parameter init (nn.Linear(D, D) weight is (out, in)).
    weight = jax.random.normal(k_w, (D, D), dtype=jnp.float32) * (1.0 / jnp.sqrt(D))
    bias = jax.random.normal(k_b, (D,), dtype=jnp.float32) * 0.02
    gamma = jnp.ones((D,), dtype=jnp.float32) + 0.01 * jax.random.normal(k_g, (D,), dtype=jnp.float32)
    beta = 0.01 * jax.random.normal(k_beta, (D,), dtype=jnp.float32)

    out = self_output(hidden_states, input_tensor, weight, bias, gamma, beta, eps=eps)
    out = jax.block_until_ready(out)

    ref = self_output_reference(hidden_states, input_tensor, weight, bias, gamma, beta, eps=eps)
    assert out.shape == (B, S, D)
    assert jnp.allclose(out, ref, atol=1e-4, rtol=1e-4), "mismatch vs reference"

    print("KERNEL_OK")
</pallas_src>

<mosaic_0001>
module attributes {stable_mosaic.version = 11 : i64} {
  func.func @self_output_kernel(%arg0: i32, %arg1: memref<4x128xf32, #tpu.memory_space<vmem>>, %arg2: memref<4x128xf32, #tpu.memory_space<vmem>>, %arg3: memref<128x128xf32, #tpu.memory_space<vmem>>, %arg4: memref<3x128xf32, #tpu.memory_space<vmem>>, %arg5: memref<128x128xf32, #tpu.memory_space<vmem>>, %arg6: memref<4x128xf32, #tpu.memory_space<vmem>>) attributes {dimension_semantics = [#tpu.dimension_semantics<parallel>], iteration_bounds = array<i64: 1>, scalar_prefetch = 0 : i64, scratch_operands = 0 : i64, tpu.core_type = #tpu.core_type<tc>, window_params = [{transform_indices = @transform_0, window_bounds = array<i64: 4, 128>}, {transform_indices = @transform_1, window_bounds = array<i64: 4, 128>}, {pipeline_mode = #tpu.pipeline_mode<synchronous>, transform_indices = @transform_2, window_bounds = array<i64: 128, 128>}, {pipeline_mode = #tpu.pipeline_mode<synchronous>, transform_indices = @transform_3, window_bounds = array<i64: 3, 128>}, {pipeline_mode = #tpu.pipeline_mode<synchronous>, transform_indices = @transform_4, window_bounds = array<i64: 128, 128>}, {transform_indices = @transform_5, window_bounds = array<i64: 4, 128>}]} {
    %c0 = arith.constant 0 : index
    %c0_0 = arith.constant 0 : index
    %0 = vector.load %arg1[%c0, %c0_0] : memref<4x128xf32, #tpu.memory_space<vmem>>, vector<4x128xf32>
    %c0_1 = arith.constant 0 : index
    %c0_2 = arith.constant 0 : index
    %1 = vector.load %arg3[%c0_1, %c0_2] : memref<128x128xf32, #tpu.memory_space<vmem>>, vector<128x128xf32>
    %cst = arith.constant dense<0.000000e+00> : vector<4x128xf32>
    %2 = tpu.matmul %0, %1, %cst {dimension_numbers = #tpu.dot_dimension_numbers<[1], [0], [0], [1], [0, 0, 1, 1], [], []>} : vector<4x128xf32>, vector<128x128xf32>, vector<4x128xf32> -> vector<4x128xf32>
    %c0_3 = arith.constant 0 : index
    %c0_4 = arith.constant 0 : index
    %3 = vector.load %arg4[%c0_3, %c0_4] : memref<3x128xf32, #tpu.memory_space<vmem>>, vector<1x128xf32>
    %c1 = arith.constant 1 : index
    %c0_5 = arith.constant 0 : index
    %4 = vector.load %arg4[%c1, %c0_5] : memref<3x128xf32, #tpu.memory_space<vmem>>, vector<1x128xf32>
    %c2 = arith.constant 2 : index
    %c0_6 = arith.constant 0 : index
    %5 = vector.load %arg4[%c2, %c0_6] : memref<3x128xf32, #tpu.memory_space<vmem>>, vector<1x128xf32>
    %6 = vector.broadcast %3 : vector<1x128xf32> to vector<4x128xf32>
    %7 = arith.addf %2, %6 : vector<4x128xf32>
    %c0_7 = arith.constant 0 : index
    %c0_8 = arith.constant 0 : index
    %8 = vector.load %arg2[%c0_7, %c0_8] : memref<4x128xf32, #tpu.memory_space<vmem>>, vector<4x128xf32>
    %9 = arith.addf %7, %8 : vector<4x128xf32>
    %c0_9 = arith.constant 0 : index
    %c0_10 = arith.constant 0 : index
    %10 = vector.load %arg5[%c0_9, %c0_10] : memref<128x128xf32, #tpu.memory_space<vmem>>, vector<128x128xf32>
    %cst_11 = arith.constant dense<0.000000e+00> : vector<4x128xf32>
    %11 = tpu.matmul %9, %10, %cst_11 {dimension_numbers = #tpu.dot_dimension_numbers<[1], [0], [0], [1], [0, 0, 1, 1], [], []>} : vector<4x128xf32>, vector<128x128xf32>, vector<4x128xf32> -> vector<4x128xf32>
    %cst_12 = arith.constant 3.125000e-02 : f32
    %12 = vector.broadcast %cst_12 : f32 to vector<4x128xf32>
    %13 = arith.mulf %11, %12 : vector<4x128xf32>
    %14 = arith.subf %9, %13 : vector<4x128xf32>
    %15 = arith.mulf %14, %14 : vector<4x128xf32>
    %c0_13 = arith.constant 0 : index
    %c0_14 = arith.constant 0 : index
    %16 = vector.load %arg5[%c0_13, %c0_14] : memref<128x128xf32, #tpu.memory_space<vmem>>, vector<128x128xf32>
    %cst_15 = arith.constant dense<0.000000e+00> : vector<4x128xf32>
    %17 = tpu.matmul %15, %16, %cst_15 {dimension_numbers = #tpu.dot_dimension_numbers<[1], [0], [0], [1], [0, 0, 1, 1], [], []>} : vector<4x128xf32>, vector<128x128xf32>, vector<4x128xf32> -> vector<4x128xf32>
    %cst_16 = arith.constant 3.125000e-02 : f32
    %18 = vector.broadcast %cst_16 : f32 to vector<4x128xf32>
    %19 = arith.mulf %17, %18 : vector<4x128xf32>
    %cst_17 = arith.constant 9.99999996E-13 : f32
    %20 = vector.broadcast %cst_17 : f32 to vector<4x128xf32>
    %21 = arith.addf %19, %20 : vector<4x128xf32>
    %22 = math.rsqrt %21 : vector<4x128xf32>
    %23 = arith.mulf %14, %22 : vector<4x128xf32>
    %24 = vector.broadcast %4 : vector<1x128xf32> to vector<4x128xf32>
    %25 = arith.mulf %23, %24 : vector<4x128xf32>
    %26 = vector.broadcast %5 : vector<1x128xf32> to vector<4x128xf32>
    %27 = arith.addf %25, %26 : vector<4x128xf32>
    %c0_18 = arith.constant 0 : index
    %c0_19 = arith.constant 0 : index
    %28 = vector.load %arg6[%c0_18, %c0_19] : memref<4x128xf32, #tpu.memory_space<vmem>>, vector<4x128xf32>
    tpu.vector_store %arg6[%c0_18, %c0_19], %27 {strides = array<i32>} : memref<4x128xf32, #tpu.memory_space<vmem>>, vector<4x128xf32>,
    return
  }
  func.func @transform_0(%arg0: i32) -> (i32, i32) {
    %c0_i32 = arith.constant 0 : i32
    %c0_i32_0 = arith.constant 0 : i32
    return %arg0, %c0_i32 : i32, i32
  }
  func.func @transform_1(%arg0: i32) -> (i32, i32) {
    %c0_i32 = arith.constant 0 : i32
    %c0_i32_0 = arith.constant 0 : i32
    return %arg0, %c0_i32 : i32, i32
  }
  func.func @transform_2(%arg0: i32) -> (i32, i32) {
    %c0_i32 = arith.constant 0 : i32
    %c0_i32_0 = arith.constant 0 : i32
    %c0_i32_1 = arith.constant 0 : i32
    return %c0_i32, %c0_i32_0 : i32, i32
  }
  func.func @transform_3(%arg0: i32) -> (i32, i32) {
    %c0_i32 = arith.constant 0 : i32
    %c0_i32_0 = arith.constant 0 : i32
    %c0_i32_1 = arith.constant 0 : i32
    return %c0_i32, %c0_i32_0 : i32, i32
  }
  func.func @transform_4(%arg0: i32) -> (i32, i32) {
    %c0_i32 = arith.constant 0 : i32
    %c0_i32_0 = arith.constant 0 : i32
    %c0_i32_1 = arith.constant 0 : i32
    return %c0_i32, %c0_i32_0 : i32, i32
  }
  func.func @transform_5(%arg0: i32) -> (i32, i32) {
    %c0_i32 = arith.constant 0 : i32
    %c0_i32_0 = arith.constant 0 : i32
    return %arg0, %c0_i32 : i32, i32
  }
}

</mosaic_0001>

<llo_original>
// kernel: tpu_custom_call.1
$region0: #{tpu_custom_call.1}
  #allocation0 [shape = 'u32[]', space=smem, size = 0x4, offset = 0x4, fixed_abs, tag = 'smem constant byte address 0x4 - core index']
  #allocation1 [shape = 'u32[144,128]{1,0:T(1,128)}', space=vmem, size = 0x12000, scoped, tag = 'internal scratch']
  %s0 = inlined_call_operand.hbm [shape: f32[4,128], index: 0, kind: input, shape index: {}]
  %s1 = inlined_call_operand.hbm [shape: f32[4,128], index: 1, kind: input, shape index: {}]
  %s2 = inlined_call_operand.hbm [shape: f32[128,128], index: 2, kind: input, shape index: {}]
  %s3 = inlined_call_operand.vmem [shape: f32[3,128], index: 3, kind: input, shape index: {}]
  %s4 = inlined_call_operand.hbm [shape: f32[128,128], index: 4, kind: input, shape index: {}]
  %s5 = inlined_call_operand.hbm [shape: f32[4,128], index: 5, kind: output, shape index: {}]
  %s6 = sld [smem:[#allocation0]]
  $region46: #{tpu_custom_call.1} parent=0
    _
  %s8 = ssub.s32 1, %s6
  %s9 = scalar_select 0, %s8, %s6
  $region1: #{tpu_custom_call.1} parent=0
    #allocation2 [shape = 'u8[2048]{0}', space=vmem, size = 0x800, scoped, tag = 'input window, operand 0, single buffered']
    #allocation3 [shape = 's32[1]{0}', space=sflag, size = 0x4, scoped, tag = 'scoped memory for tpu_custom_call.1']
    #allocation4 [shape = 's32[1]{0}', space=sflag, size = 0x4, scoped, tag = 'scoped memory for tpu_custom_call.1']
    #allocation5 [shape = 'u8[2048]{0}', space=vmem, size = 0x800, scoped, tag = 'input window, operand 1, single buffered']
    #allocation6 [shape = 's32[1]{0}', space=sflag, size = 0x4, scoped, tag = 'scoped memory for tpu_custom_call.1']
    #allocation7 [shape = 'u8[65536]{0}', space=vmem, size = 0x10000, scoped, tag = 'input window, operand 2, single buffered']
    #allocation8 [shape = 'u8[65536]{0}', space=vmem, size = 0x10000, scoped, tag = 'input window, operand 4, single buffered']
    #allocation9 [shape = 's32[1]{0}', space=sflag, size = 0x4, scoped, tag = 'scoped memory for tpu_custom_call.1']
    #allocation10 [shape = 'u8[2048]{0}', space=vmem, size = 0x800, scoped, tag = 'output window, operand 0, single buffered']
    %10 = vsyncpa [#allocation3], 0
    %11 = vsyncpa [#allocation6], 0
    %12 = vsyncpa [#allocation9], 0
    %13 = vsyncpa [#allocation4], 0
    // Predicated region
    $region2: #{tpu_custom_call.1} parent=1 // pred_check
      _
    $region3: #{tpu_custom_call.1} parent=1 // pred_check_branch
      %15 = sbr.rel (0) target = $region5
    $region4: #{tpu_custom_call.1} parent=1 // pred_region
      %s17 = ssub.s32 64, 64
      %18 = vsyncadd [#allocation3], %s17
      %s20 = sshll.u32 [#allocation2], 4
      %s21 = int_to_ptr.vmem [resolvable:$true] %s20
      %23 = dma.hbm_to_vmem [thread:$0]  %s0, 64, %s21, [#allocation3]
    $region5: #{tpu_custom_call.1} parent=1 // pred_fallthru
      _
    // Predicated region
    $region6: #{tpu_custom_call.1} parent=1 // pred_check
      _
    $region7: #{tpu_custom_call.1} parent=1 // pred_check_branch
      %25 = sbr.rel (0) target = $region9
    $region8: #{tpu_custom_call.1} parent=1 // pred_region
      %s27 = ssub.s32 64, 64
      %28 = vsyncadd [#allocation6], %s27
      %s30 = sshll.u32 [#allocation5], 4
      %s31 = int_to_ptr.vmem [resolvable:$true] %s30
      %33 = dma.hbm_to_vmem [thread:$0]  %s1, 64, %s31, [#allocation6]
    $region9: #{tpu_custom_call.1} parent=1 // pred_fallthru
      _
    // Predicated region
    $region10: #{tpu_custom_call.1} parent=1 // pred_check
      _
    $region11: #{tpu_custom_call.1} parent=1 // pred_check_branch
      %35 = sbr.rel (0) target = $region13
    $region12: #{tpu_custom_call.1} parent=1 // pred_region
      %s37 = ssub.s32 2048, 2048
      %38 = vsyncadd [#allocation6], %s37
      %s39 = sshll.u32 [#allocation7], 4
      %s40 = int_to_ptr.vmem [resolvable:$true] %s39
      %45 = dma.hbm_to_vmem [thread:$0]  %s2, 2048, %s40, [#allocation6], 128, 128, 8
    $region13: #{tpu_custom_call.1} parent=1 // pred_fallthru
      _
    // Predicated region
    $region14: #{tpu_custom_call.1} parent=1 // pred_check
      _
    $region15: #{tpu_custom_call.1} parent=1 // pred_check_branch
      %47 = sbr.rel (0) target = $region17
    $region16: #{tpu_custom_call.1} parent=1 // pred_region
      _
    $region17: #{tpu_custom_call.1} parent=1 // pred_fallthru
      _
    // Predicated region
    $region18: #{tpu_custom_call.1} parent=1 // pred_check
      _
    $region19: #{tpu_custom_call.1} parent=1 // pred_check_branch
      %49 = sbr.rel (0) target = $region21
    $region20: #{tpu_custom_call.1} parent=1 // pred_region
      %s51 = ssub.s32 2048, 2048
      %52 = vsyncadd [#allocation9], %s51
      %s53 = sshll.u32 [#allocation8], 4
      %s54 = int_to_ptr.vmem [resolvable:$true] %s53
      %59 = dma.hbm_to_vmem [thread:$0]  %s4, 2048, %s54, [#allocation9], 128, 128, 8
    $region21: #{tpu_custom_call.1} parent=1 // pred_fallthru
      _
    // Predicated region
    $region22: #{tpu_custom_call.1} parent=1 // pred_check
      _
    $region23: #{tpu_custom_call.1} parent=1 // pred_check_branch
      %61 = sbr.rel (0) target = $region25
    $region24: #{tpu_custom_call.1} parent=1 // pred_region
      %62 = dma.done [#allocation3], 64
    $region25: #{tpu_custom_call.1} parent=1 // pred_fallthru
      _
    // Predicated region
    $region26: #{tpu_custom_call.1} parent=1 // pred_check
      _
    $region27: #{tpu_custom_call.1} parent=1 // pred_check_branch
      %64 = sbr.rel (0) target = $region29
    $region28: #{tpu_custom_call.1} parent=1 // pred_region
      %65 = dma.done [#allocation6], 64
    $region29: #{tpu_custom_call.1} parent=1 // pred_fallthru
      _
    // Predicated region
    $region30: #{tpu_custom_call.1} parent=1 // pred_check
      _
    $region31: #{tpu_custom_call.1} parent=1 // pred_check_branch
      %67 = sbr.rel (0) target = $region33
    $region32: #{tpu_custom_call.1} parent=1 // pred_region
      %68 = dma.done [#allocation6], 2048
    $region33: #{tpu_custom_call.1} parent=1 // pred_fallthru
      _
    // Predicated region
    $region34: #{tpu_custom_call.1} parent=1 // pred_check
      _
    $region35: #{tpu_custom_call.1} parent=1 // pred_check_branch
      %70 = sbr.rel (0) target = $region37
    $region36: #{tpu_custom_call.1} parent=1 // pred_region
      %71 = dma.done [#allocation9], 2048
    $region37: #{tpu_custom_call.1} parent=1 // pred_fallthru
      _
    %v72 = vld [vmem:[#allocation2] sm:$0xf]
    %v73 = vld [vmem:[#allocation7] sm:$0xff]
    %v74 = vld [vmem:[#allocation7 + $0x8] sm:$0xff]
    %v75 = vld [vmem:[#allocation7 + $0x10] sm:$0xff]
    %v76 = vld [vmem:[#allocation7 + $0x18] sm:$0xff]
    %v77 = vld [vmem:[#allocation7 + $0x20] sm:$0xff]
    %v78 = vld [vmem:[#allocation7 + $0x28] sm:$0xff]
    %v79 = vld [vmem:[#allocation7 + $0x30] sm:$0xff]
    %v80 = vld [vmem:[#allocation7 + $0x38] sm:$0xff]
    %v81 = vld [vmem:[#allocation7 + $0x40] sm:$0xff]
    %v82 = vld [vmem:[#allocation7 + $0x48] sm:$0xff]
    %v83 = vld [vmem:[#allocation7 + $0x50] sm:$0xff]
    %v84 = vld [vmem:[#allocation7 + $0x58] sm:$0xff]
    %v85 = vld [vmem:[#allocation7 + $0x60] sm:$0xff]
    %v86 = vld [vmem:[#allocation7 + $0x68] sm:$0xff]
    %v87 = vld [vmem:[#allocation7 + $0x70] sm:$0xff]
    %v88 = vld [vmem:[#allocation7 + $0x78] sm:$0xff]
    %v89 = vld [vmem:[%s3] sm:$0x1]
    %v90 = vld [vmem:[%s3 + $0x1] sm:$0x1]
    %v91 = vld [vmem:[%s3 + $0x2] sm:$0x1]
    %v92 = vlaneseq
    %v93 = vshrl.u32 %v92, 7
    %v94 = vsub.s32 0, %v93
    %v95 = vrot.slane %v89, %v94
    %96 = vmatprep.subr.mxu0 0.0
    %97 = vmatpush1.msra.mxu0 %v73
    %98 = vmatprep.subr.mxu0 0.0
    %99 = vmatpush1.msra.mxu0 %v74
    %100 = vmatprep.subr.mxu0 0.0
    %101 = vmatpush1.msra.mxu0 %v75
    %102 = vmatprep.subr.mxu0 0.0
    %103 = vmatpush1.msra.mxu0 %v76
    %104 = vmatprep.subr.mxu0 0.0
    %105 = vmatpush1.msra.mxu0 %v77
    %106 = vmatprep.subr.mxu0 0.0
    %107 = vmatpush1.msra.mxu0 %v78
    %108 = vmatprep.subr.mxu0 0.0
    %109 = vmatpush1.msra.mxu0 %v79
    %110 = vmatprep.subr.mxu0 0.0
    %111 = vmatpush1.msra.mxu0 %v80
    %112 = vmatprep.subr.mxu0 0.0
    %113 = vmatpush1.msra.mxu0 %v81
    %114 = vmatprep.subr.mxu0 0.0
    %115 = vmatpush1.msra.mxu0 %v82
    %116 = vmatprep.subr.mxu0 0.0
    %117 = vmatpush1.msra.mxu0 %v83
    %118 = vmatprep.subr.mxu0 0.0
    %119 = vmatpush1.msra.mxu0 %v84
    %120 = vmatprep.subr.mxu0 0.0
    %121 = vmatpush1.msra.mxu0 %v85
    %122 = vmatprep.subr.mxu0 0.0
    %123 = vmatpush1.msra.mxu0 %v86
    %124 = vmatprep.subr.mxu0 0.0
    %125 = vmatpush1.msra.mxu0 %v87
    %126 = vmatprep.subr.mxu0 0.0
    %127 = vmatpush1.msra.mxu0 %v88
    %128 = vmatprep.subr.mxu0 0.0
    %129 = vmatpush1.msra.mxu0 0.0
    %130 = vmatprep.subr.mxu0 0.0
    %131 = vmatpush1.msra.mxu0 0.0
    %132 = vmatprep.subr.mxu0 0.0
    %133 = vmatpush1.msra.mxu0 0.0
    %134 = vmatprep.subr.mxu0 0.0
    %135 = vmatpush1.msra.mxu0 0.0
    %136 = vmatprep.subr.mxu0 0.0
    %137 = vmatpush1.msra.mxu0 0.0
    %138 = vmatprep.subr.mxu0 0.0
    %139 = vmatpush1.msra.mxu0 0.0
    %140 = vmatprep.subr.mxu0 0.0
    %141 = vmatpush1.msra.mxu0 0.0
    %142 = vmatprep.subr.mxu0 0.0
    %143 = vmatpush1.msra.mxu0 0.0
    %144 = vmatprep.subr.mxu0 0.0
    %145 = vmatpush1.msra.mxu0 0.0
    %146 = vmatprep.subr.mxu0 0.0
    %147 = vmatpush1.msra.mxu0 0.0
    %148 = vmatprep.subr.mxu0 0.0
    %149 = vmatpush1.msra.mxu0 0.0
    %150 = vmatprep.subr.mxu0 0.0
    %151 = vmatpush1.msra.mxu0 0.0
    %152 = vmatprep.subr.mxu0 0.0
    %153 = vmatpush1.msra.mxu0 0.0
    %154 = vmatprep.subr.mxu0 0.0
    %155 = vmatpush1.msra.mxu0 0.0
    %156 = vmatprep.subr.mxu0 0.0
    %157 = vmatpush1.msra.mxu0 0.0
    %158 = vmatprep.subr.mxu0 0.0
    %159 = vmatpush1.msra.mxu0 0.0
    %160 = vmatprep.mubr.f32.mxu0 0.0
    %161 = vmatmul.mubr.f32.gmra.mrb[0].mxu0 %v72
    %v162 = vpop.f32.mrb[0].mxu0
    %v163 = vadd.f32 %v95, %v162
    %v164 = vpop.f32.mrb[0].mxu0
    %165 = vdwg.mxu0
    %v166 = vld [vmem:[#allocation5] sm:$0xf]
    %v167 = vadd.f32 %v163, %v166
    %v168 = vld [vmem:[#allocation8] sm:$0xff]
    %v169 = vld [vmem:[#allocation8 + $0x8] sm:$0xff]
    %v170 = vld [vmem:[#allocation8 + $0x10] sm:$0xff]
    %v171 = vld [vmem:[#allocation8 + $0x18] sm:$0xff]
    %v172 = vld [vmem:[#allocation8 + $0x20] sm:$0xff]
    %v173 = vld [vmem:[#allocation8 + $0x28] sm:$0xff]
    %v174 = vld [vmem:[#allocation8 + $0x30] sm:$0xff]
    %v175 = vld [vmem:[#allocation8 + $0x38] sm:$0xff]
    %v176 = vld [vmem:[#allocation8 + $0x40] sm:$0xff]
    %v177 = vld [vmem:[#allocation8 + $0x48] sm:$0xff]
    %v178 = vld [vmem:[#allocation8 + $0x50] sm:$0xff]
    %v179 = vld [vmem:[#allocation8 + $0x58] sm:$0xff]
    %v180 = vld [vmem:[#allocation8 + $0x60] sm:$0xff]
    %v181 = vld [vmem:[#allocation8 + $0x68] sm:$0xff]
    %v182 = vld [vmem:[#allocation8 + $0x70] sm:$0xff]
    %v183 = vld [vmem:[#allocation8 + $0x78] sm:$0xff]
    %184 = vmatprep.subr.mxu0 0.0
    %185 = vmatpush1.msra.mxu0 %v168
    %186 = vmatprep.subr.mxu0 0.0
    %187 = vmatpush1.msra.mxu0 %v169
    %188 = vmatprep.subr.mxu0 0.0
    %189 = vmatpush1.msra.mxu0 %v170
    %190 = vmatprep.subr.mxu0 0.0
    %191 = vmatpush1.msra.mxu0 %v171
    %192 = vmatprep.subr.mxu0 0.0
    %193 = vmatpush1.msra.mxu0 %v172
    %194 = vmatprep.subr.mxu0 0.0
    %195 = vmatpush1.msra.mxu0 %v173
    %196 = vmatprep.subr.mxu0 0.0
    %197 = vmatpush1.msra.mxu0 %v174
    %198 = vmatprep.subr.mxu0 0.0
    %199 = vmatpush1.msra.mxu0 %v175
    %200 = vmatprep.subr.mxu0 0.0
    %201 = vmatpush1.msra.mxu0 %v176
    %202 = vmatprep.subr.mxu0 0.0
    %203 = vmatpush1.msra.mxu0 %v177
    %204 = vmatprep.subr.mxu0 0.0
    %205 = vmatpush1.msra.mxu0 %v178
    %206 = vmatprep.subr.mxu0 0.0
    %207 = vmatpush1.msra.mxu0 %v179
    %208 = vmatprep.subr.mxu0 0.0
    %209 = vmatpush1.msra.mxu0 %v180
    %210 = vmatprep.subr.mxu0 0.0
    %211 = vmatpush1.msra.mxu0 %v181
    %212 = vmatprep.subr.mxu0 0.0
    %213 = vmatpush1.msra.mxu0 %v182
    %214 = vmatprep.subr.mxu0 0.0
    %215 = vmatpush1.msra.mxu0 %v183
    %216 = vmatprep.subr.mxu0 0.0
    %217 = vmatpush1.msra.mxu0 0.0
    %218 = vmatprep.subr.mxu0 0.0
    %219 = vmatpush1.msra.mxu0 0.0
    %220 = vmatprep.subr.mxu0 0.0
    %221 = vmatpush1.msra.mxu0 0.0
    %222 = vmatprep.subr.mxu0 0.0
    %223 = vmatpush1.msra.mxu0 0.0
    %224 = vmatprep.subr.mxu0 0.0
    %225 = vmatpush1.msra.mxu0 0.0
    %226 = vmatprep.subr.mxu0 0.0
    %227 = vmatpush1.msra.mxu0 0.0
    %228 = vmatprep.subr.mxu0 0.0
    %229 = vmatpush1.msra.mxu0 0.0
    %230 = vmatprep.subr.mxu0 0.0
    %231 = vmatpush1.msra.mxu0 0.0
    %232 = vmatprep.subr.mxu0 0.0
    %233 = vmatpush1.msra.mxu0 0.0
    %234 = vmatprep.subr.mxu0 0.0
    %235 = vmatpush1.msra.mxu0 0.0
    %236 = vmatprep.subr.mxu0 0.0
    %237 = vmatpush1.msra.mxu0 0.0
    %238 = vmatprep.subr.mxu0 0.0
    %239 = vmatpush1.msra.mxu0 0.0
    %240 = vmatprep.subr.mxu0 0.0
    %241 = vmatpush1.msra.mxu0 0.0
    %242 = vmatprep.subr.mxu0 0.0
    %243 = vmatpush1.msra.mxu0 0.0
    %244 = vmatprep.subr.mxu0 0.0
    %245 = vmatpush1.msra.mxu0 0.0
    %246 = vmatprep.subr.mxu0 0.0
    %247 = vmatpush1.msra.mxu0 0.0
    %248 = vmatprep.mubr.f32.mxu0 0.0
    %249 = vmatmul.mubr.f32.gmra.mrb[0].mxu0 %v167
    %v250 = vpop.f32.mrb[0].mxu0
    %v251 = vadd.f32 0.0, %v250
    %v252 = vpop.f32.mrb[0].mxu0
    %253 = vdwg.mxu0
    %v254 = vmul.f32 %v251, 0.03125
    %v255 = vsub.f32 %v167, %v254
    %v256 = vmul.f32 %v255, %v255
    %257 = vmatprep.subr.mxu0 0.0
    %258 = vmatpush1.msra.mxu0 %v168
    %259 = vmatprep.subr.mxu0 0.0
    %260 = vmatpush1.msra.mxu0 %v169
    %261 = vmatprep.subr.mxu0 0.0
    %262 = vmatpush1.msra.mxu0 %v170
    %263 = vmatprep.subr.mxu0 0.0
    %264 = vmatpush1.msra.mxu0 %v171
    %265 = vmatprep.subr.mxu0 0.0
    %266 = vmatpush1.msra.mxu0 %v172
    %267 = vmatprep.subr.mxu0 0.0
    %268 = vmatpush1.msra.mxu0 %v173
    %269 = vmatprep.subr.mxu0 0.0
    %270 = vmatpush1.msra.mxu0 %v174
    %271 = vmatprep.subr.mxu0 0.0
    %272 = vmatpush1.msra.mxu0 %v175
    %273 = vmatprep.subr.mxu0 0.0
    %274 = vmatpush1.msra.mxu0 %v176
    %275 = vmatprep.subr.mxu0 0.0
    %276 = vmatpush1.msra.mxu0 %v177
    %277 = vmatprep.subr.mxu0 0.0
    %278 = vmatpush1.msra.mxu0 %v178
    %279 = vmatprep.subr.mxu0 0.0
    %280 = vmatpush1.msra.mxu0 %v179
    %281 = vmatprep.subr.mxu0 0.0
    %282 = vmatpush1.msra.mxu0 %v180
    %283 = vmatprep.subr.mxu0 0.0
    %284 = vmatpush1.msra.mxu0 %v181
    %285 = vmatprep.subr.mxu0 0.0
    %286 = vmatpush1.msra.mxu0 %v182
    %287 = vmatprep.subr.mxu0 0.0
    %288 = vmatpush1.msra.mxu0 %v183
    %289 = vmatprep.subr.mxu0 0.0
    %290 = vmatpush1.msra.mxu0 0.0
    %291 = vmatprep.subr.mxu0 0.0
    %292 = vmatpush1.msra.mxu0 0.0
    %293 = vmatprep.subr.mxu0 0.0
    %294 = vmatpush1.msra.mxu0 0.0
    %295 = vmatprep.subr.mxu0 0.0
    %296 = vmatpush1.msra.mxu0 0.0
    %297 = vmatprep.subr.mxu0 0.0
    %298 = vmatpush1.msra.mxu0 0.0
    %299 = vmatprep.subr.mxu0 0.0
    %300 = vmatpush1.msra.mxu0 0.0
    %301 = vmatprep.subr.mxu0 0.0
    %302 = vmatpush1.msra.mxu0 0.0
    %303 = vmatprep.subr.mxu0 0.0
    %304 = vmatpush1.msra.mxu0 0.0
    %305 = vmatprep.subr.mxu0 0.0
    %306 = vmatpush1.msra.mxu0 0.0
    %307 = vmatprep.subr.mxu0 0.0
    %308 = vmatpush1.msra.mxu0 0.0
    %309 = vmatprep.subr.mxu0 0.0
    %310 = vmatpush1.msra.mxu0 0.0
    %311 = vmatprep.subr.mxu0 0.0
    %312 = vmatpush1.msra.mxu0 0.0
    %313 = vmatprep.subr.mxu0 0.0
    %314 = vmatpush1.msra.mxu0 0.0
    %315 = vmatprep.subr.mxu0 0.0
    %316 = vmatpush1.msra.mxu0 0.0
    %317 = vmatprep.subr.mxu0 0.0
    %318 = vmatpush1.msra.mxu0 0.0
    %319 = vmatprep.subr.mxu0 0.0
    %320 = vmatpush1.msra.mxu0 0.0
    %321 = vmatprep.mubr.f32.mxu0 0.0
    %322 = vmatmul.mubr.f32.gmra.mrb[0].mxu0 %v256
    %v323 = vpop.f32.mrb[0].mxu0
    %v324 = vadd.f32 0.0, %v323
    %v325 = vpop.f32.mrb[0].mxu0
    %326 = vdwg.mxu0
    %v327 = vmul.f32 %v324, 0.03125
    %v328 = vadd.f32 %v327, 1e-12
    %v329 = vrsqrt.pop %v328
    %v330 = vmul.f32 %v255, %v329
    %v331 = vlaneseq
    %v332 = vshrl.u32 %v331, 7
    %v333 = vsub.s32 0, %v332
    %v334 = vrot.slane %v90, %v333
    %v335 = vmul.f32 %v330, %v334
    %v336 = vlaneseq
    %v337 = vshrl.u32 %v336, 7
    %v338 = vsub.s32 0, %v337
    %v339 = vrot.slane %v91, %v338
    %v340 = vadd.f32 %v335, %v339
    %341 = vst [vmem:[#allocation10] sm:$0xf] %v340
    // Predicated region
    $region38: #{tpu_custom_call.1} parent=1 // pred_check
      _
    $region39: #{tpu_custom_call.1} parent=1 // pred_check_branch
      %343 = sbr.rel (0) target = $region41
    $region40: #{tpu_custom_call.1} parent=1 // pred_region
      %s345 = ssub.s32 64, 64
      %346 = vsyncadd [#allocation4], %s345
      %s348 = sshll.u32 [#allocation10], 4
      %s349 = int_to_ptr.vmem [resolvable:$true] %s348
      %351 = dma.vmem_to_hbm [thread:$0]  %s349, 64, %s5, [#allocation4]
    $region41: #{tpu_custom_call.1} parent=1 // pred_fallthru
      _
    // Predicated region
    $region42: #{tpu_custom_call.1} parent=1 // pred_check
      _
    $region43: #{tpu_custom_call.1} parent=1 // pred_check_branch
      %353 = sbr.rel (0) target = $region45
    $region44: #{tpu_custom_call.1} parent=1 // pred_region
      %354 = dma.done [#allocation4], 64
    $region45: #{tpu_custom_call.1} parent=1 // pred_fallthru
      _
    %355 = vsyncpa [#allocation3], 1
    %356 = vsyncpa [#allocation6], 1
    %357 = vsyncpa [#allocation9], 1
    %358 = vsyncpa [#allocation4], 1

</llo_original>
